<compile_context>
chip_gen: v7x
topology: tpu7x:2x2x1
jax: 0.10.0
libtpu: 0.0.40
codegen_flags: <defaults>
</compile_context>

<pallas_src>
import numpy as np
import jax
import jax.numpy as jnp
from jax.experimental import pallas as pl
from jax.experimental.pallas import tpu as pltpu


def _orthogonal(key, shape, gain):
    """Deterministic orthogonal init (matches torch.nn.init.orthogonal_ semantics)."""
    rows, cols = shape
    flat = jax.random.normal(key, (rows, cols), dtype=jnp.float32)
    if rows < cols:
        flat = flat.T
    q, r = jnp.linalg.qr(flat)
    d = jnp.sign(jnp.diag(r))       # sign-correct so the decomposition is unique
    q = q * d[None, :]
    if rows < cols:
        q = q.T
    return gain * q


def _round_up(x: int, m: int) -> int:
    return ((x + m - 1) // m) * m


def critic_kernel(x_ref, w1_ref, b1_ref, w2_ref, b2_ref, o_ref):
    # Layer 1 on the MXU: h = tanh(x @ W1 + b1); accumulate in f32, tanh in f32.
    h = jnp.dot(x_ref[...], w1_ref[...], preferred_element_type=jnp.float32)
    h = jnp.tanh(h + b1_ref[...])
    # Layer 2 (N == 1): VPU elementwise multiply + lane reduction (XLU slot),
    # instead of an MXU matmul that would use 1/256 of the output columns.
    v = jnp.sum(h * w2_ref[...], axis=-1, keepdims=True) + b2_ref[0]
    o_ref[...] = v.astype(o_ref.dtype)


def meta_agent_critic(hidden_state, w1, b1, w2_row, b2, *,
                      tile_b: int = 512, mxu_dtype=jnp.bfloat16):
    """hidden_state: [B, H] -> value: [B, 1] float32.

    w1: [H, 512] (transpose of torch layout), b1: [1, 512],
    w2_row: [1, 512] (torch layout of Linear(512, 1).weight), b2: [1].
    mxu_dtype=None keeps the first matmul operands in f32.
    """
    if isinstance(hidden_state, tuple):
        hidden_state = hidden_state[0]
    x = hidden_state
    B, H = x.shape
    mid = w1.shape[1]  # 512

    if mxu_dtype is not None:
        x = x.astype(mxu_dtype)
        w1 = w1.astype(mxu_dtype)

    # Batch tiling: sublane-aligned tile, pad B so the grid divides evenly.
    tile_b = max(8, min(tile_b, _round_up(B, 8)))
    tile_b = _round_up(tile_b, 8)
    b_pad = _round_up(B, tile_b)
    if b_pad != B:
        x = jnp.pad(x, ((0, b_pad - B), (0, 0)))
    num_tiles = b_pad // tile_b

    # TODO(synk): for very large H (>~2048), add a K ("arbitrary") grid axis
    # with an f32 VMEM accumulator so W1 K-tiles fit v7x's 64 MiB VMEM.
    out = pl.pallas_call(
        critic_kernel,
        out_shape=jax.ShapeDtypeStruct((b_pad, 1), jnp.float32),
        grid=(num_tiles,),
        in_specs=[
            pl.BlockSpec((tile_b, H), lambda i: (i, 0)),          # x: tiled over B
            pl.BlockSpec((H, mid), lambda i: (0, 0)),             # W1: resident
            pl.BlockSpec((1, mid), lambda i: (0, 0)),             # b1: resident
            pl.BlockSpec((1, mid), lambda i: (0, 0)),             # W2 row: resident
            pl.BlockSpec(memory_space=pltpu.MemorySpace.SMEM),    # b2 scalar in SMEM
        ],
        out_specs=pl.BlockSpec((tile_b, 1), lambda i: (i, 0)),
        compiler_params=pltpu.CompilerParams(
            dimension_semantics=("parallel",)),                   # megacore on v7x
    )(x, w1, b1, w2_row, b2)

    return out[:B]


def init_params(hidden_size: int, key):
    k1, k2 = jax.random.split(key, 2)
    # layer_init(nn.Linear(hidden, 512), std=sqrt(2)); torch weight is [512, H],
    # stored transposed as [H, 512] so the kernel computes x @ W1.
    w1_t = _orthogonal(k1, (512, hidden_size), gain=float(np.sqrt(2.0)))
    w1 = jnp.asarray(w1_t).T                                       # [H, 512]
    b1 = jnp.zeros((1, 512), dtype=jnp.float32)
    # layer_init(nn.Linear(512, 1), std=1.0); torch weight is [1, 512] which is
    # exactly the lane-dense row layout the kernel wants.
    w2_row = jnp.asarray(_orthogonal(k2, (1, 512), gain=1.0))      # [1, 512]
    b2 = jnp.zeros((1,), dtype=jnp.float32)
    return w1, b1, w2_row, b2


def _reference(x, w1, b1, w2_row, b2):
    return jnp.tanh(x @ w1 + b1) @ w2_row.T + b2


if __name__ == "__main__":
    key = jax.random.PRNGKey(0)
    k_in, k_in2, k_par = jax.random.split(key, 3)

    batch = 8
    hidden_size = 32

    hidden_state = jax.random.normal(k_in, (batch, hidden_size), dtype=jnp.float32)
    w1, b1, w2_row, b2 = init_params(hidden_size, k_par)
    ref = _reference(hidden_state, w1, b1, w2_row, b2)

    # 1) exact f32 path (strict tolerance)
    out_f32 = meta_agent_critic(hidden_state, w1, b1, w2_row, b2, mxu_dtype=None)
    out_f32 = jax.block_until_ready(out_f32)
    assert out_f32.shape == (batch, 1)
    np.testing.assert_allclose(np.asarray(out_f32), np.asarray(ref),
                               rtol=1e-5, atol=1e-5)

    # 2) default bf16-MXU path (looser tolerance for bf16 operands)
    out_bf16 = meta_agent_critic(hidden_state, w1, b1, w2_row, b2)
    out_bf16 = jax.block_until_ready(out_bf16)
    np.testing.assert_allclose(np.asarray(out_bf16), np.asarray(ref),
                               rtol=5e-2, atol=2e-2)

    # 3) exercise the batch grid + padding (B not a multiple of the tile)
    batch2 = 20
    hs2 = jax.random.normal(k_in2, (batch2, hidden_size), dtype=jnp.float32)
    ref2 = _reference(hs2, w1, b1, w2_row, b2)
    out2 = meta_agent_critic(hs2, w1, b1, w2_row, b2, tile_b=8, mxu_dtype=None)
    out2 = jax.block_until_ready(out2)
    assert out2.shape == (batch2, 1)
    np.testing.assert_allclose(np.asarray(out2), np.asarray(ref2),
                               rtol=1e-5, atol=1e-5)

    print("KERNEL_OK")
</pallas_src>

<mosaic_0001>
module attributes {stable_mosaic.version = 11 : i64} {
  func.func @critic_kernel(%arg0: i32, %arg1: memref<8x32xf32, #tpu.memory_space<vmem>>, %arg2: memref<32x512xf32, #tpu.memory_space<vmem>>, %arg3: memref<1x512xf32, #tpu.memory_space<vmem>>, %arg4: memref<1x512xf32, #tpu.memory_space<vmem>>, %arg5: memref<1xf32, #tpu.memory_space<smem>>, %arg6: memref<8x1xf32, #tpu.memory_space<vmem>>) attributes {dimension_semantics = [#tpu.dimension_semantics<parallel>], iteration_bounds = array<i64: 1>, scalar_prefetch = 0 : i64, scratch_operands = 0 : i64, tpu.core_type = #tpu.core_type<tc>, window_params = [{transform_indices = @transform_0, window_bounds = array<i64: 8, 32>}, {pipeline_mode = #tpu.pipeline_mode<synchronous>, transform_indices = @transform_1, window_bounds = array<i64: 32, 512>}, {pipeline_mode = #tpu.pipeline_mode<synchronous>, transform_indices = @transform_2, window_bounds = array<i64: 1, 512>}, {pipeline_mode = #tpu.pipeline_mode<synchronous>, transform_indices = @transform_3, window_bounds = array<i64: 1, 512>}, {transform_indices = @transform_4, window_bounds = array<i64: 1>}, {transform_indices = @transform_5, window_bounds = array<i64: 8, 1>}]} {
    %c0 = arith.constant 0 : index
    %c0_0 = arith.constant 0 : index
    %0 = vector.load %arg1[%c0, %c0_0] : memref<8x32xf32, #tpu.memory_space<vmem>>, vector<8x32xf32>
    %c0_1 = arith.constant 0 : index
    %c0_2 = arith.constant 0 : index
    %1 = vector.load %arg2[%c0_1, %c0_2] : memref<32x512xf32, #tpu.memory_space<vmem>>, vector<32x512xf32>
    %cst = arith.constant dense<0.000000e+00> : vector<8x512xf32>
    %2 = tpu.matmul %0, %1, %cst {dimension_numbers = #tpu.dot_dimension_numbers<[1], [0], [0], [1], [0, 0, 1, 1], [], []>} : vector<8x32xf32>, vector<32x512xf32>, vector<8x512xf32> -> vector<8x512xf32>
    %c0_3 = arith.constant 0 : index
    %c0_4 = arith.constant 0 : index
    %3 = vector.load %arg3[%c0_3, %c0_4] : memref<1x512xf32, #tpu.memory_space<vmem>>, vector<1x512xf32>
    %4 = vector.broadcast %3 : vector<1x512xf32> to vector<8x512xf32>
    %5 = arith.addf %2, %4 : vector<8x512xf32>
    %6 = math.tanh %5 : vector<8x512xf32>
    %c0_5 = arith.constant 0 : index
    %c0_6 = arith.constant 0 : index
    %7 = vector.load %arg4[%c0_5, %c0_6] : memref<1x512xf32, #tpu.memory_space<vmem>>, vector<1x512xf32>
    %8 = vector.broadcast %7 : vector<1x512xf32> to vector<8x512xf32>
    %9 = arith.mulf %6, %8 : vector<8x512xf32>
    %cst_7 = arith.constant dense<0.000000e+00> : vector<8xf32>
    %10 = vector.multi_reduction <add>, %9, %cst_7 [1] : vector<8x512xf32> to vector<8xf32>
    %11 = vector.shape_cast %10 : vector<8xf32> to vector<8x1xf32>
    %c0_8 = arith.constant 0 : index
    %12 = memref.load %arg5[%c0_8] : memref<1xf32, #tpu.memory_space<smem>>
    %13 = vector.broadcast %12 : f32 to vector<8x1xf32>
    %14 = arith.addf %11, %13 : vector<8x1xf32>
    %c0_9 = arith.constant 0 : index
    %c0_10 = arith.constant 0 : index
    %15 = vector.load %arg6[%c0_9, %c0_10] : memref<8x1xf32, #tpu.memory_space<vmem>>, vector<8x1xf32>
    tpu.vector_store %arg6[%c0_9, %c0_10], %14 {strides = array<i32>} : memref<8x1xf32, #tpu.memory_space<vmem>>, vector<8x1xf32>,
    return
  }
  func.func @transform_0(%arg0: i32) -> (i32, i32) {
    %c0_i32 = arith.constant 0 : i32
    %c0_i32_0 = arith.constant 0 : i32
    return %arg0, %c0_i32 : i32, i32
  }
  func.func @transform_1(%arg0: i32) -> (i32, i32) {
    %c0_i32 = arith.constant 0 : i32
    %c0_i32_0 = arith.constant 0 : i32
    %c0_i32_1 = arith.constant 0 : i32
    return %c0_i32, %c0_i32_0 : i32, i32
  }
  func.func @transform_2(%arg0: i32) -> (i32, i32) {
    %c0_i32 = arith.constant 0 : i32
    %c0_i32_0 = arith.constant 0 : i32
    %c0_i32_1 = arith.constant 0 : i32
    return %c0_i32, %c0_i32_0 : i32, i32
  }
  func.func @transform_3(%arg0: i32) -> (i32, i32) {
    %c0_i32 = arith.constant 0 : i32
    %c0_i32_0 = arith.constant 0 : i32
    %c0_i32_1 = arith.constant 0 : i32
    return %c0_i32, %c0_i32_0 : i32, i32
  }
  func.func @transform_4(%arg0: i32) -> i32 {
    %c0_i32 = arith.constant 0 : i32
    %c0_i32_0 = arith.constant 0 : i32
    return %c0_i32 : i32
  }
  func.func @transform_5(%arg0: i32) -> (i32, i32) {
    %c0_i32 = arith.constant 0 : i32
    %c0_i32_0 = arith.constant 0 : i32
    return %arg0, %c0_i32 : i32, i32
  }
}

</mosaic_0001>

<llo_original>
// kernel: tpu_custom_call.1
$region0: #{tpu_custom_call.1}
  #allocation0 [shape = 'u32[]', space=smem, size = 0x4, offset = 0x4, fixed_abs, tag = 'smem constant byte address 0x4 - core index']
  #allocation1 [shape = 'u32[144,128]{1,0:T(1,128)}', space=vmem, size = 0x12000, scoped, tag = 'internal scratch']
  #allocation2 [shape = 'f32[1]{0:T(128)S(6)}', space=smem, size = 0x200, scoped, tag = 'scoped memory for tpu_custom_call.1']
  %s0 = inlined_call_operand.hbm [shape: f32[8,32], index: 0, kind: input, shape index: {}]
  %s1 = inlined_call_operand.hbm [shape: f32[32,512], index: 1, kind: input, shape index: {}]
  %s2 = inlined_call_operand.vmem [shape: f32[1,512], index: 2, kind: input, shape index: {}]
  %s3 = inlined_call_operand.vmem [shape: f32[1,512], index: 3, kind: input, shape index: {}]
  %s4 = inlined_call_operand.<no memory space> [shape: f32[1], index: 4, kind: input, shape index: {}]
  %s5 = inlined_call_operand.vmem [shape: f32[8,1], index: 5, kind: output, shape index: {}]
  %s6 = sld [smem:[#allocation0]]
  $region38: #{tpu_custom_call.1} parent=0
    _
  %s8 = ssub.s32 1, %s6
  %s9 = scalar_select 0, %s8, %s6
  %10 = sst [smem:[#allocation2]] %s4
  $region1: #{tpu_custom_call.1} parent=0
    #allocation3 [shape = 'u8[4096]{0}', space=vmem, size = 0x1000, scoped, tag = 'input window, operand 0, single buffered']
    #allocation4 [shape = 's32[1]{0}', space=sflag, size = 0x4, scoped, tag = 'scoped memory for tpu_custom_call.1']
    #allocation5 [shape = 'u8[65536]{0}', space=vmem, size = 0x10000, scoped, tag = 'input window, operand 1, single buffered']
    #allocation6 [shape = 's32[1]{0}', space=sflag, size = 0x4, scoped, tag = 'scoped memory for tpu_custom_call.1']
    %11 = vsyncpa [#allocation4], 0
    %12 = vsyncpa [#allocation6], 0
    // Predicated region
    $region2: #{tpu_custom_call.1} parent=1 // pred_check
      _
    $region3: #{tpu_custom_call.1} parent=1 // pred_check_branch
      %14 = sbr.rel (0) target = $region5
    $region4: #{tpu_custom_call.1} parent=1 // pred_region
      %s16 = ssub.s32 128, 128
      %17 = vsyncadd [#allocation4], %s16
      %s19 = sshll.u32 [#allocation3], 4
      %s20 = int_to_ptr.vmem [resolvable:$true] %s19
      %22 = dma.hbm_to_vmem [thread:$0]  %s0, 128, %s20, [#allocation4]
    $region5: #{tpu_custom_call.1} parent=1 // pred_fallthru
      _
    // Predicated region
    $region6: #{tpu_custom_call.1} parent=1 // pred_check
      _
    $region7: #{tpu_custom_call.1} parent=1 // pred_check_branch
      %24 = sbr.rel (0) target = $region9
    $region8: #{tpu_custom_call.1} parent=1 // pred_region
      %s26 = ssub.s32 2048, 2048
      %27 = vsyncadd [#allocation6], %s26
      %s28 = sshll.u32 [#allocation5], 4
      %s29 = int_to_ptr.vmem [resolvable:$true] %s28
      %34 = dma.hbm_to_vmem [thread:$0]  %s1, 2048, %s29, [#allocation6], 512, 512, 32
    $region9: #{tpu_custom_call.1} parent=1 // pred_fallthru
      _
    // Predicated region
    $region10: #{tpu_custom_call.1} parent=1 // pred_check
      _
    $region11: #{tpu_custom_call.1} parent=1 // pred_check_branch
      %36 = sbr.rel (0) target = $region13
    $region12: #{tpu_custom_call.1} parent=1 // pred_region
      _
    $region13: #{tpu_custom_call.1} parent=1 // pred_fallthru
      _
    // Predicated region
    $region14: #{tpu_custom_call.1} parent=1 // pred_check
      _
    $region15: #{tpu_custom_call.1} parent=1 // pred_check_branch
      %38 = sbr.rel (0) target = $region17
    $region16: #{tpu_custom_call.1} parent=1 // pred_region
      _
    $region17: #{tpu_custom_call.1} parent=1 // pred_fallthru
      _
    // Predicated region
    $region18: #{tpu_custom_call.1} parent=1 // pred_check
      _
    $region19: #{tpu_custom_call.1} parent=1 // pred_check_branch
      %40 = sbr.rel (0) target = $region21
    $region20: #{tpu_custom_call.1} parent=1 // pred_region
      _
    $region21: #{tpu_custom_call.1} parent=1 // pred_fallthru
      _
    // Predicated region
    $region22: #{tpu_custom_call.1} parent=1 // pred_check
      _
    $region23: #{tpu_custom_call.1} parent=1 // pred_check_branch
      %42 = sbr.rel (0) target = $region25
    $region24: #{tpu_custom_call.1} parent=1 // pred_region
      %43 = dma.done [#allocation4], 128
    $region25: #{tpu_custom_call.1} parent=1 // pred_fallthru
      _
    // Predicated region
    $region26: #{tpu_custom_call.1} parent=1 // pred_check
      _
    $region27: #{tpu_custom_call.1} parent=1 // pred_check_branch
      %45 = sbr.rel (0) target = $region29
    $region28: #{tpu_custom_call.1} parent=1 // pred_region
      %46 = dma.done [#allocation6], 2048
    $region29: #{tpu_custom_call.1} parent=1 // pred_fallthru
      _
    %v47 = vld [vmem:[#allocation3] sm:$0xff]
    %v48 = vld [vmem:[#allocation5] sm:$0xff]
    %v49 = vld [vmem:[#allocation5 + $0x8] sm:$0xff]
    %v50 = vld [vmem:[#allocation5 + $0x10] sm:$0xff]
    %v51 = vld [vmem:[#allocation5 + $0x18] sm:$0xff]
    %v52 = vld [vmem:[#allocation5 + $0x20] sm:$0xff]
    %v53 = vld [vmem:[#allocation5 + $0x28] sm:$0xff]
    %v54 = vld [vmem:[#allocation5 + $0x30] sm:$0xff]
    %v55 = vld [vmem:[#allocation5 + $0x38] sm:$0xff]
    %v56 = vld [vmem:[#allocation5 + $0x40] sm:$0xff]
    %v57 = vld [vmem:[#allocation5 + $0x48] sm:$0xff]
    %v58 = vld [vmem:[#allocation5 + $0x50] sm:$0xff]
    %v59 = vld [vmem:[#allocation5 + $0x58] sm:$0xff]
    %v60 = vld [vmem:[#allocation5 + $0x60] sm:$0xff]
    %v61 = vld [vmem:[#allocation5 + $0x68] sm:$0xff]
    %v62 = vld [vmem:[#allocation5 + $0x70] sm:$0xff]
    %v63 = vld [vmem:[#allocation5 + $0x78] sm:$0xff]
    %v64 = vld [vmem:[%s2] sm:$0xf]
    %v66 = vlaneseq
    %v67 = vshrl.u32 %v66, 7
    %v68 = vsub.s32 0, %v67
    %v69 = vrot.slane %v64, %v68
    %v70 = vlaneseq
    %v71 = vshrl.u32 %v70, 7
    %v72 = vsub.s32 1, %v71
    %v73 = vrot.slane %v64, %v72
    %v74 = vlaneseq
    %v75 = vshrl.u32 %v74, 7
    %v76 = vsub.s32 2, %v75
    %v77 = vrot.slane %v64, %v76
    %v78 = vlaneseq
    %v79 = vshrl.u32 %v78, 7
    %v80 = vsub.s32 3, %v79
    %v81 = vrot.slane %v64, %v80
    %vm86 = vcmask 261120
    %v88 = vsel %vm86, %v47, 0
    %90 = vmatprep.subr.mxu0 %v49
    %91 = vmatpush1.msra.mxu0 %v48
    %92 = vmatprep.subr.mxu0 %v53
    %93 = vmatpush1.msra.mxu0 %v52
    %94 = vmatprep.subr.mxu0 %v57
    %95 = vmatpush1.msra.mxu0 %v56
    %96 = vmatprep.subr.mxu0 %v61
    %97 = vmatpush1.msra.mxu0 %v60
    %98 = vmatprep.subr.mxu0 0.0
    %99 = vmatpush1.msra.mxu0 0.0
    %100 = vmatprep.subr.mxu0 0.0
    %101 = vmatpush1.msra.mxu0 0.0
    %102 = vmatprep.subr.mxu0 0.0
    %103 = vmatpush1.msra.mxu0 0.0
    %104 = vmatprep.subr.mxu0 0.0
    %105 = vmatpush1.msra.mxu0 0.0
    %106 = vmatprep.subr.mxu0 0.0
    %107 = vmatpush1.msra.mxu0 0.0
    %108 = vmatprep.subr.mxu0 0.0
    %109 = vmatpush1.msra.mxu0 0.0
    %110 = vmatprep.subr.mxu0 0.0
    %111 = vmatpush1.msra.mxu0 0.0
    %112 = vmatprep.subr.mxu0 0.0
    %113 = vmatpush1.msra.mxu0 0.0
    %114 = vmatprep.subr.mxu0 0.0
    %115 = vmatpush1.msra.mxu0 0.0
    %116 = vmatprep.subr.mxu0 0.0
    %117 = vmatpush1.msra.mxu0 0.0
    %118 = vmatprep.subr.mxu0 0.0
    %119 = vmatpush1.msra.mxu0 0.0
    %120 = vmatprep.subr.mxu0 0.0
    %121 = vmatpush1.msra.mxu0 0.0
    %122 = vmatprep.subr.mxu0 0.0
    %123 = vmatpush1.msra.mxu0 0.0
    %124 = vmatprep.subr.mxu0 0.0
    %125 = vmatpush1.msra.mxu0 0.0
    %126 = vmatprep.subr.mxu0 0.0
    %127 = vmatpush1.msra.mxu0 0.0
    %128 = vmatprep.subr.mxu0 0.0
    %129 = vmatpush1.msra.mxu0 0.0
    %130 = vmatprep.subr.mxu0 0.0
    %131 = vmatpush1.msra.mxu0 0.0
    %132 = vmatprep.subr.mxu0 0.0
    %133 = vmatpush1.msra.mxu0 0.0
    %134 = vmatprep.subr.mxu0 0.0
    %135 = vmatpush1.msra.mxu0 0.0
    %136 = vmatprep.subr.mxu0 0.0
    %137 = vmatpush1.msra.mxu0 0.0
    %138 = vmatprep.subr.mxu0 0.0
    %139 = vmatpush1.msra.mxu0 0.0
    %140 = vmatprep.subr.mxu0 0.0
    %141 = vmatpush1.msra.mxu0 0.0
    %142 = vmatprep.subr.mxu0 0.0
    %143 = vmatpush1.msra.mxu0 0.0
    %144 = vmatprep.subr.mxu0 0.0
    %145 = vmatpush1.msra.mxu0 0.0
    %146 = vmatprep.subr.mxu0 0.0
    %147 = vmatpush1.msra.mxu0 0.0
    %148 = vmatprep.subr.mxu0 0.0
    %149 = vmatpush1.msra.mxu0 0.0
    %150 = vmatprep.subr.mxu0 0.0
    %151 = vmatpush1.msra.mxu0 0.0
    %152 = vmatprep.subr.mxu0 0.0
    %153 = vmatpush1.msra.mxu0 0.0
    %154 = vmatprep.mubr.f32.mxu0 0.0
    %155 = vmatmul.mubr.f32.gmra.mrb[0].mxu0 %v88
    %v156 = vpop.f32.mrb[0].mxu0
    %v157 = vadd.f32 %v69, %v156
    %v158 = vpop.f32.mrb[0].mxu0
    %v159 = vadd.f32 %v73, %v158
    %160 = vdwg.mxu0
    %161 = vmatprep.subr.mxu0 %v51
    %162 = vmatpush1.msra.mxu0 %v50
    %163 = vmatprep.subr.mxu0 %v55
    %164 = vmatpush1.msra.mxu0 %v54
    %165 = vmatprep.subr.mxu0 %v59
    %166 = vmatpush1.msra.mxu0 %v58
    %167 = vmatprep.subr.mxu0 %v63
    %168 = vmatpush1.msra.mxu0 %v62
    %169 = vmatprep.subr.mxu0 0.0
    %170 = vmatpush1.msra.mxu0 0.0
    %171 = vmatprep.subr.mxu0 0.0
    %172 = vmatpush1.msra.mxu0 0.0
    %173 = vmatprep.subr.mxu0 0.0
    %174 = vmatpush1.msra.mxu0 0.0
    %175 = vmatprep.subr.mxu0 0.0
    %176 = vmatpush1.msra.mxu0 0.0
    %177 = vmatprep.subr.mxu0 0.0
    %178 = vmatpush1.msra.mxu0 0.0
    %179 = vmatprep.subr.mxu0 0.0
    %180 = vmatpush1.msra.mxu0 0.0
    %181 = vmatprep.subr.mxu0 0.0
    %182 = vmatpush1.msra.mxu0 0.0
    %183 = vmatprep.subr.mxu0 0.0
    %184 = vmatpush1.msra.mxu0 0.0
    %185 = vmatprep.subr.mxu0 0.0
    %186 = vmatpush1.msra.mxu0 0.0
    %187 = vmatprep.subr.mxu0 0.0
    %188 = vmatpush1.msra.mxu0 0.0
    %189 = vmatprep.subr.mxu0 0.0
    %190 = vmatpush1.msra.mxu0 0.0
    %191 = vmatprep.subr.mxu0 0.0
    %192 = vmatpush1.msra.mxu0 0.0
    %193 = vmatprep.subr.mxu0 0.0
    %194 = vmatpush1.msra.mxu0 0.0
    %195 = vmatprep.subr.mxu0 0.0
    %196 = vmatpush1.msra.mxu0 0.0
    %197 = vmatprep.subr.mxu0 0.0
    %198 = vmatpush1.msra.mxu0 0.0
    %199 = vmatprep.subr.mxu0 0.0
    %200 = vmatpush1.msra.mxu0 0.0
    %201 = vmatprep.subr.mxu0 0.0
    %202 = vmatpush1.msra.mxu0 0.0
    %203 = vmatprep.subr.mxu0 0.0
    %204 = vmatpush1.msra.mxu0 0.0
    %205 = vmatprep.subr.mxu0 0.0
    %206 = vmatpush1.msra.mxu0 0.0
    %207 = vmatprep.subr.mxu0 0.0
    %208 = vmatpush1.msra.mxu0 0.0
    %209 = vmatprep.subr.mxu0 0.0
    %210 = vmatpush1.msra.mxu0 0.0
    %211 = vmatprep.subr.mxu0 0.0
    %212 = vmatpush1.msra.mxu0 0.0
    %213 = vmatprep.subr.mxu0 0.0
    %214 = vmatpush1.msra.mxu0 0.0
    %215 = vmatprep.subr.mxu0 0.0
    %216 = vmatpush1.msra.mxu0 0.0
    %217 = vmatprep.subr.mxu0 0.0
    %218 = vmatpush1.msra.mxu0 0.0
    %219 = vmatprep.subr.mxu0 0.0
    %220 = vmatpush1.msra.mxu0 0.0
    %221 = vmatprep.subr.mxu0 0.0
    %222 = vmatpush1.msra.mxu0 0.0
    %223 = vmatprep.subr.mxu0 0.0
    %224 = vmatpush1.msra.mxu0 0.0
    %225 = vmatprep.mubr.f32.mxu0 0.0
    %226 = vmatmul.mubr.f32.gmra.mrb[0].mxu0 %v88
    %v227 = vpop.f32.mrb[0].mxu0
    %v228 = vadd.f32 %v77, %v227
    %v229 = vpop.f32.mrb[0].mxu0
    %v230 = vadd.f32 %v81, %v229
    %231 = vdwg.mxu0
    %v232 = vtanh.pop %v157
    %v233 = vtanh.pop %v159
    %v234 = vtanh.pop %v228
    %v235 = vtanh.pop %v230
    %v236 = vld [vmem:[%s3] sm:$0xf]
    %v238 = vlaneseq
    %v239 = vshrl.u32 %v238, 7
    %v240 = vsub.s32 0, %v239
    %v241 = vrot.slane %v236, %v240
    %v242 = vlaneseq
    %v243 = vshrl.u32 %v242, 7
    %v244 = vsub.s32 1, %v243
    %v245 = vrot.slane %v236, %v244
    %v246 = vlaneseq
    %v247 = vshrl.u32 %v246, 7
    %v248 = vsub.s32 2, %v247
    %v249 = vrot.slane %v236, %v248
    %v250 = vlaneseq
    %v251 = vshrl.u32 %v250, 7
    %v252 = vsub.s32 3, %v251
    %v253 = vrot.slane %v236, %v252
    %v258 = vmul.f32 %v232, %v241
    %v259 = vmul.f32 %v233, %v245
    %v260 = vmul.f32 %v234, %v249
    %v261 = vmul.f32 %v235, %v253
    %v262 = vadd.f32 %v258, %v259
    %v263 = vadd.f32 %v262, %v260
    %v264 = vadd.f32 %v263, %v261
    %265 = vadd.xlane.f32.xlu0 %v264
    %v266 = vpop.xlane.xlu0 %265
    %s267 = sld [smem:[#allocation2]]
    %v268 = vstv %s267
    %v269 = vadd.f32 %v266, %v268
    %vm270 = vcmask 7168
    %271 = vst.msk [vmem:[%s5] sm:$0xff] %vm270, %v269
    // Predicated region
    $region30: #{tpu_custom_call.1} parent=1 // pred_check
      _
    $region31: #{tpu_custom_call.1} parent=1 // pred_check_branch
      %273 = sbr.rel (0) target = $region33
    $region32: #{tpu_custom_call.1} parent=1 // pred_region
      _
    $region33: #{tpu_custom_call.1} parent=1 // pred_fallthru
      _
    // Predicated region
    $region34: #{tpu_custom_call.1} parent=1 // pred_check
      _
    $region35: #{tpu_custom_call.1} parent=1 // pred_check_branch
      %275 = sbr.rel (0) target = $region37
    $region36: #{tpu_custom_call.1} parent=1 // pred_region
      _
    $region37: #{tpu_custom_call.1} parent=1 // pred_fallthru
      _
    %276 = vsyncpa [#allocation4], 1
    %277 = vsyncpa [#allocation6], 1

</llo_original>
